<compile_context>
chip_gen: v7x
topology: tpu7x:2x2x1
jax: 0.10.0
libtpu: 0.0.40
codegen_flags: <defaults>
</compile_context>

<pallas_src>
import functools

import jax
import jax.numpy as jnp
from jax.experimental import pallas as pl
from jax.experimental.pallas import tpu as pltpu


def _mlp_kernel(x_ref, w_ref, shift_ref, o_ref):
    """o = relu(x @ W_scaled + shift). No K split, no scratch, single store."""
    y = jnp.dot(x_ref[...], w_ref[...], preferred_element_type=jnp.float32)
    y = y + shift_ref[...]
    o_ref[...] = jnp.maximum(y, 0.0).astype(o_ref.dtype)


@functools.partial(jax.jit, static_argnames=("tm", "tn"))
def mlp_forward(x, w_scaled, shift, *, tm=None, tn=None):
    """x: (B, D) f32, w_scaled: (D, N) f32 (BN scale folded in),
    shift: (1, N) f32 -> (B, N) f32.

    Defaults collapse the grid to a single step (tm=B, tn=N); the whole problem
    (x + W + out << VMEM) is resident at once. For larger problems tm/tn can be
    reduced; both grid axes are 'parallel' (useful for v7x's 2 TensorCores).
    """
    B, D = x.shape
    _, N = w_scaled.shape
    if tm is None:
        tm = B
    if tn is None:
        tn = N
    grid = (pl.cdiv(B, tm), pl.cdiv(N, tn))

    cost = pl.CostEstimate(
        flops=2 * B * D * N,
        transcendentals=0,
        bytes_accessed=4 * (B * D + D * N + B * N + N),
    )

    return pl.pallas_call(
        _mlp_kernel,
        out_shape=jax.ShapeDtypeStruct((B, N), x.dtype),
        grid_spec=pltpu.PrefetchScalarGridSpec(
            num_scalar_prefetch=0,
            grid=grid,
            in_specs=[
                pl.BlockSpec((tm, D), lambda i, j: (i, 0)),   # x tile (full K)
                pl.BlockSpec((D, tn), lambda i, j: (0, j)),   # scaled W^T tile
                pl.BlockSpec((1, tn), lambda i, j: (0, j)),   # BN/bias shift row
            ],
            out_specs=pl.BlockSpec((tm, tn), lambda i, j: (i, j)),
        ),
        compiler_params=pltpu.CompilerParams(
            dimension_semantics=("parallel", "parallel"),
        ),
        cost_estimate=cost,
    )(x, w_scaled, shift)


def make_params(key, input_dim, num_neurons):
    """Deterministic parameter init matching the module's __init__ shapes."""
    k_w, k_b, k_g, k_beta, k_rm, k_rv = jax.random.split(key, 6)
    # nn.Linear: weight (N, D), bias (N)
    bound = 1.0 / jnp.sqrt(jnp.float32(input_dim))
    weight = jax.random.uniform(
        k_w, (num_neurons, input_dim), jnp.float32, -bound, bound
    )
    bias = jax.random.uniform(k_b, (num_neurons,), jnp.float32, -bound, bound)
    # nn.BatchNorm1d: weight(gamma), bias(beta), running_mean, running_var
    gamma = 1.0 + 0.1 * jax.random.normal(k_g, (num_neurons,), jnp.float32)
    beta = 0.1 * jax.random.normal(k_beta, (num_neurons,), jnp.float32)
    running_mean = 0.1 * jax.random.normal(k_rm, (num_neurons,), jnp.float32)
    running_var = jax.nn.softplus(
        jax.random.normal(k_rv, (num_neurons,), jnp.float32)
    ) + 0.5
    return weight, bias, gamma, beta, running_mean, running_var


def fold_params(weight, bias, gamma, beta, running_mean, running_var, eps=1e-5):
    """Fold Linear + BatchNorm(eval) into: y = relu(x @ w_scaled + shift)."""
    inv_std = 1.0 / jnp.sqrt(running_var + eps)
    scale = gamma * inv_std                                   # (N,)
    w_scaled = weight.T * scale[None, :]                      # (D, N)
    shift = ((bias - running_mean) * scale + beta)[None, :]   # (1, N)
    return w_scaled, shift


def mlp_reference(x, weight, bias, gamma, beta, running_mean, running_var, eps=1e-5):
    """Plain-JAX reference: Linear -> BatchNorm1d(eval) -> ReLU."""
    y = x @ weight.T + bias
    y = (y - running_mean) / jnp.sqrt(running_var + eps) * gamma + beta
    return jnp.maximum(y, 0.0)


if __name__ == "__main__":
    key = jax.random.PRNGKey(0)
    k_x, k_p = jax.random.split(key)

    B, input_dim, num_neurons = 16, 256, 512
    x = jax.random.normal(k_x, (B, input_dim), jnp.float32)

    weight, bias, gamma, beta, running_mean, running_var = make_params(
        k_p, input_dim, num_neurons
    )
    w_scaled, shift = fold_params(
        weight, bias, gamma, beta, running_mean, running_var
    )

    out = mlp_forward(x, w_scaled, shift)
    out = jax.block_until_ready(out)

    ref = mlp_reference(x, weight, bias, gamma, beta, running_mean, running_var)
    assert out.shape == (B, num_neurons)
    assert jnp.allclose(out, ref, atol=1e-4, rtol=1e-4), float(
        jnp.max(jnp.abs(out - ref))
    )
    print("KERNEL_OK")
</pallas_src>

<mosaic_0001>
module attributes {stable_mosaic.version = 11 : i64} {
  func.func @_mlp_kernel(%arg0: i32, %arg1: i32, %arg2: memref<16x256xf32, #tpu.memory_space<vmem>>, %arg3: memref<256x512xf32, #tpu.memory_space<vmem>>, %arg4: memref<1x512xf32, #tpu.memory_space<vmem>>, %arg5: memref<16x512xf32, #tpu.memory_space<vmem>>) attributes {dimension_semantics = [#tpu.dimension_semantics<parallel>, #tpu.dimension_semantics<parallel>], iteration_bounds = array<i64: 1, 1>, scalar_prefetch = 0 : i64, scratch_operands = 0 : i64, tpu.core_type = #tpu.core_type<tc>, window_params = [{transform_indices = @transform_0, window_bounds = array<i64: 16, 256>}, {transform_indices = @transform_1, window_bounds = array<i64: 256, 512>}, {transform_indices = @transform_2, window_bounds = array<i64: 1, 512>}, {transform_indices = @transform_3, window_bounds = array<i64: 16, 512>}]} {
    %c0 = arith.constant 0 : index
    %c0_0 = arith.constant 0 : index
    %0 = vector.load %arg2[%c0, %c0_0] : memref<16x256xf32, #tpu.memory_space<vmem>>, vector<16x256xf32>
    %c0_1 = arith.constant 0 : index
    %c0_2 = arith.constant 0 : index
    %1 = vector.load %arg3[%c0_1, %c0_2] : memref<256x512xf32, #tpu.memory_space<vmem>>, vector<256x512xf32>
    %cst = arith.constant dense<0.000000e+00> : vector<16x512xf32>
    %2 = tpu.matmul %0, %1, %cst {dimension_numbers = #tpu.dot_dimension_numbers<[1], [0], [0], [1], [0, 0, 1, 1], [], []>} : vector<16x256xf32>, vector<256x512xf32>, vector<16x512xf32> -> vector<16x512xf32>
    %c0_3 = arith.constant 0 : index
    %c0_4 = arith.constant 0 : index
    %3 = vector.load %arg4[%c0_3, %c0_4] : memref<1x512xf32, #tpu.memory_space<vmem>>, vector<1x512xf32>
    %4 = vector.broadcast %3 : vector<1x512xf32> to vector<16x512xf32>
    %5 = arith.addf %2, %4 : vector<16x512xf32>
    %cst_5 = arith.constant 0.000000e+00 : f32
    %6 = vector.broadcast %cst_5 : f32 to vector<16x512xf32>
    %7 = arith.maximumf %5, %6 : vector<16x512xf32>
    %c0_6 = arith.constant 0 : index
    %c0_7 = arith.constant 0 : index
    %8 = vector.load %arg5[%c0_6, %c0_7] : memref<16x512xf32, #tpu.memory_space<vmem>>, vector<16x512xf32>
    tpu.vector_store %arg5[%c0_6, %c0_7], %7 {strides = array<i32>} : memref<16x512xf32, #tpu.memory_space<vmem>>, vector<16x512xf32>,
    return
  }
  func.func @transform_0(%arg0: i32, %arg1: i32) -> (i32, i32) {
    %c0_i32 = arith.constant 0 : i32
    %c0_i32_0 = arith.constant 0 : i32
    return %arg0, %c0_i32 : i32, i32
  }
  func.func @transform_1(%arg0: i32, %arg1: i32) -> (i32, i32) {
    %c0_i32 = arith.constant 0 : i32
    %c0_i32_0 = arith.constant 0 : i32
    return %c0_i32, %arg1 : i32, i32
  }
  func.func @transform_2(%arg0: i32, %arg1: i32) -> (i32, i32) {
    %c0_i32 = arith.constant 0 : i32
    %c0_i32_0 = arith.constant 0 : i32
    return %c0_i32, %arg1 : i32, i32
  }
  func.func @transform_3(%arg0: i32, %arg1: i32) -> (i32, i32) {
    %c0_i32 = arith.constant 0 : i32
    return %arg0, %arg1 : i32, i32
  }
}

</mosaic_0001>

<llo_original>
// kernel: mlp_forward.1
$region0: #{mlp_forward.1}
  #allocation0 [shape = 'u32[]', space=smem, size = 0x4, offset = 0x4, fixed_abs, tag = 'smem constant byte address 0x4 - core index']
  #allocation1 [shape = 'u32[144,128]{1,0:T(1,128)}', space=vmem, size = 0x12000, scoped, tag = 'internal scratch']
  %s0 = inlined_call_operand.hbm [shape: f32[16,256], index: 0, kind: input, shape index: {}]
  %s1 = inlined_call_operand.hbm [shape: f32[256,512], index: 1, kind: input, shape index: {}]
  %s2 = inlined_call_operand.vmem [shape: f32[1,512], index: 2, kind: input, shape index: {}]
  %s3 = inlined_call_operand.hbm [shape: f32[16,512], index: 3, kind: output, shape index: {}]
  %s4 = sld [smem:[#allocation0]]
  $region30: #{mlp_forward.1} parent=0
    _
  %s6 = ssub.s32 1, %s4
  %s7 = scalar_select 0, %s6, %s4
  $region1: #{mlp_forward.1} parent=0
    #allocation2 [shape = 'u8[16384]{0}', space=vmem, size = 0x4000, scoped, tag = 'input window, operand 0, single buffered']
    #allocation3 [shape = 's32[1]{0}', space=sflag, size = 0x4, scoped, tag = 'scoped memory for mlp_forward.1']
    #allocation4 [shape = 's32[1]{0}', space=sflag, size = 0x4, scoped, tag = 'scoped memory for mlp_forward.1']
    #allocation5 [shape = 'u8[524288]{0}', space=vmem, size = 0x80000, scoped, tag = 'input window, operand 1, single buffered']
    #allocation6 [shape = 's32[1]{0}', space=sflag, size = 0x4, scoped, tag = 'scoped memory for mlp_forward.1']
    #allocation7 [shape = 'u8[32768]{0}', space=vmem, size = 0x8000, scoped, tag = 'output window, operand 0, single buffered']
    %8 = vsyncpa [#allocation3], 0
    %9 = vsyncpa [#allocation6], 0
    %10 = vsyncpa [#allocation4], 0
    // Predicated region
    $region2: #{mlp_forward.1} parent=1 // pred_check
      _
    $region3: #{mlp_forward.1} parent=1 // pred_check_branch
      %12 = sbr.rel (0) target = $region5
    $region4: #{mlp_forward.1} parent=1 // pred_region
      %s14 = ssub.s32 512, 512
      %15 = vsyncadd [#allocation3], %s14
      %s16 = sshll.u32 [#allocation2], 4
      %s17 = int_to_ptr.vmem [resolvable:$true] %s16
      %22 = dma.hbm_to_vmem [thread:$0]  %s0, 512, %s17, [#allocation3], 256, 256, 16
    $region5: #{mlp_forward.1} parent=1 // pred_fallthru
      _
    // Predicated region
    $region6: #{mlp_forward.1} parent=1 // pred_check
      _
    $region7: #{mlp_forward.1} parent=1 // pred_check_branch
      %24 = sbr.rel (0) target = $region9
    $region8: #{mlp_forward.1} parent=1 // pred_region
      %s26 = ssub.s32 16384, 16384
      %27 = vsyncadd [#allocation6], %s26
      %s28 = sshll.u32 [#allocation5], 4
      %s29 = int_to_ptr.vmem [resolvable:$true] %s28
      %34 = dma.hbm_to_vmem [thread:$0]  %s1, 16384, %s29, [#allocation6], 512, 512, 32
    $region9: #{mlp_forward.1} parent=1 // pred_fallthru
      _
    // Predicated region
    $region10: #{mlp_forward.1} parent=1 // pred_check
      _
    $region11: #{mlp_forward.1} parent=1 // pred_check_branch
      %36 = sbr.rel (0) target = $region13
    $region12: #{mlp_forward.1} parent=1 // pred_region
      _
    $region13: #{mlp_forward.1} parent=1 // pred_fallthru
      _
    // Predicated region
    $region14: #{mlp_forward.1} parent=1 // pred_check
      _
    $region15: #{mlp_forward.1} parent=1 // pred_check_branch
      %38 = sbr.rel (0) target = $region17
    $region16: #{mlp_forward.1} parent=1 // pred_region
      %39 = dma.done [#allocation3], 512
    $region17: #{mlp_forward.1} parent=1 // pred_fallthru
      _
    // Predicated region
    $region18: #{mlp_forward.1} parent=1 // pred_check
      _
    $region19: #{mlp_forward.1} parent=1 // pred_check_branch
      %41 = sbr.rel (0) target = $region21
    $region20: #{mlp_forward.1} parent=1 // pred_region
      %42 = dma.done [#allocation6], 16384
    $region21: #{mlp_forward.1} parent=1 // pred_fallthru
      _
    %v43 = vld [vmem:[#allocation2] sm:$0xff]
    %v44 = vld [vmem:[#allocation2 + $0x8] sm:$0xff]
    %v45 = vld [vmem:[#allocation2 + $0x10] sm:$0xff]
    %v46 = vld [vmem:[#allocation2 + $0x18] sm:$0xff]
    %v47 = vld [vmem:[#allocation5] sm:$0xff]
    %v48 = vld [vmem:[#allocation5 + $0x8] sm:$0xff]
    %v49 = vld [vmem:[#allocation5 + $0x10] sm:$0xff]
    %v50 = vld [vmem:[#allocation5 + $0x18] sm:$0xff]
    %v51 = vld [vmem:[#allocation5 + $0x20] sm:$0xff]
    %v52 = vld [vmem:[#allocation5 + $0x28] sm:$0xff]
    %v53 = vld [vmem:[#allocation5 + $0x30] sm:$0xff]
    %v54 = vld [vmem:[#allocation5 + $0x38] sm:$0xff]
    %v55 = vld [vmem:[#allocation5 + $0x40] sm:$0xff]
    %v56 = vld [vmem:[#allocation5 + $0x48] sm:$0xff]
    %v57 = vld [vmem:[#allocation5 + $0x50] sm:$0xff]
    %v58 = vld [vmem:[#allocation5 + $0x58] sm:$0xff]
    %v59 = vld [vmem:[#allocation5 + $0x60] sm:$0xff]
    %v60 = vld [vmem:[#allocation5 + $0x68] sm:$0xff]
    %v61 = vld [vmem:[#allocation5 + $0x70] sm:$0xff]
    %v62 = vld [vmem:[#allocation5 + $0x78] sm:$0xff]
    %v63 = vld [vmem:[#allocation5 + $0x80] sm:$0xff]
    %v64 = vld [vmem:[#allocation5 + $0x88] sm:$0xff]
    %v65 = vld [vmem:[#allocation5 + $0x90] sm:$0xff]
    %v66 = vld [vmem:[#allocation5 + $0x98] sm:$0xff]
    %v67 = vld [vmem:[#allocation5 + $0xa0] sm:$0xff]
    %v68 = vld [vmem:[#allocation5 + $0xa8] sm:$0xff]
    %v69 = vld [vmem:[#allocation5 + $0xb0] sm:$0xff]
    %v70 = vld [vmem:[#allocation5 + $0xb8] sm:$0xff]
    %v71 = vld [vmem:[#allocation5 + $0xc0] sm:$0xff]
    %v72 = vld [vmem:[#allocation5 + $0xc8] sm:$0xff]
    %v73 = vld [vmem:[#allocation5 + $0xd0] sm:$0xff]
    %v74 = vld [vmem:[#allocation5 + $0xd8] sm:$0xff]
    %v75 = vld [vmem:[#allocation5 + $0xe0] sm:$0xff]
    %v76 = vld [vmem:[#allocation5 + $0xe8] sm:$0xff]
    %v77 = vld [vmem:[#allocation5 + $0xf0] sm:$0xff]
    %v78 = vld [vmem:[#allocation5 + $0xf8] sm:$0xff]
    %v79 = vld [vmem:[#allocation5 + $0x100] sm:$0xff]
    %v80 = vld [vmem:[#allocation5 + $0x108] sm:$0xff]
    %v81 = vld [vmem:[#allocation5 + $0x110] sm:$0xff]
    %v82 = vld [vmem:[#allocation5 + $0x118] sm:$0xff]
    %v83 = vld [vmem:[#allocation5 + $0x120] sm:$0xff]
    %v84 = vld [vmem:[#allocation5 + $0x128] sm:$0xff]
    %v85 = vld [vmem:[#allocation5 + $0x130] sm:$0xff]
    %v86 = vld [vmem:[#allocation5 + $0x138] sm:$0xff]
    %v87 = vld [vmem:[#allocation5 + $0x140] sm:$0xff]
    %v88 = vld [vmem:[#allocation5 + $0x148] sm:$0xff]
    %v89 = vld [vmem:[#allocation5 + $0x150] sm:$0xff]
    %v90 = vld [vmem:[#allocation5 + $0x158] sm:$0xff]
    %v91 = vld [vmem:[#allocation5 + $0x160] sm:$0xff]
    %v92 = vld [vmem:[#allocation5 + $0x168] sm:$0xff]
    %v93 = vld [vmem:[#allocation5 + $0x170] sm:$0xff]
    %v94 = vld [vmem:[#allocation5 + $0x178] sm:$0xff]
    %v95 = vld [vmem:[#allocation5 + $0x180] sm:$0xff]
    %v96 = vld [vmem:[#allocation5 + $0x188] sm:$0xff]
    %v97 = vld [vmem:[#allocation5 + $0x190] sm:$0xff]
    %v98 = vld [vmem:[#allocation5 + $0x198] sm:$0xff]
    %v99 = vld [vmem:[#allocation5 + $0x1a0] sm:$0xff]
    %v100 = vld [vmem:[#allocation5 + $0x1a8] sm:$0xff]
    %v101 = vld [vmem:[#allocation5 + $0x1b0] sm:$0xff]
    %v102 = vld [vmem:[#allocation5 + $0x1b8] sm:$0xff]
    %v103 = vld [vmem:[#allocation5 + $0x1c0] sm:$0xff]
    %v104 = vld [vmem:[#allocation5 + $0x1c8] sm:$0xff]
    %v105 = vld [vmem:[#allocation5 + $0x1d0] sm:$0xff]
    %v106 = vld [vmem:[#allocation5 + $0x1d8] sm:$0xff]
    %v107 = vld [vmem:[#allocation5 + $0x1e0] sm:$0xff]
    %v108 = vld [vmem:[#allocation5 + $0x1e8] sm:$0xff]
    %v109 = vld [vmem:[#allocation5 + $0x1f0] sm:$0xff]
    %v110 = vld [vmem:[#allocation5 + $0x1f8] sm:$0xff]
    %v111 = vld [vmem:[#allocation5 + $0x200] sm:$0xff]
    %v112 = vld [vmem:[#allocation5 + $0x208] sm:$0xff]
    %v113 = vld [vmem:[#allocation5 + $0x210] sm:$0xff]
    %v114 = vld [vmem:[#allocation5 + $0x218] sm:$0xff]
    %v115 = vld [vmem:[#allocation5 + $0x220] sm:$0xff]
    %v116 = vld [vmem:[#allocation5 + $0x228] sm:$0xff]
    %v117 = vld [vmem:[#allocation5 + $0x230] sm:$0xff]
    %v118 = vld [vmem:[#allocation5 + $0x238] sm:$0xff]
    %v119 = vld [vmem:[#allocation5 + $0x240] sm:$0xff]
    %v120 = vld [vmem:[#allocation5 + $0x248] sm:$0xff]
    %v121 = vld [vmem:[#allocation5 + $0x250] sm:$0xff]
    %v122 = vld [vmem:[#allocation5 + $0x258] sm:$0xff]
    %v123 = vld [vmem:[#allocation5 + $0x260] sm:$0xff]
    %v124 = vld [vmem:[#allocation5 + $0x268] sm:$0xff]
    %v125 = vld [vmem:[#allocation5 + $0x270] sm:$0xff]
    %v126 = vld [vmem:[#allocation5 + $0x278] sm:$0xff]
    %v127 = vld [vmem:[#allocation5 + $0x280] sm:$0xff]
    %v128 = vld [vmem:[#allocation5 + $0x288] sm:$0xff]
    %v129 = vld [vmem:[#allocation5 + $0x290] sm:$0xff]
    %v130 = vld [vmem:[#allocation5 + $0x298] sm:$0xff]
    %v131 = vld [vmem:[#allocation5 + $0x2a0] sm:$0xff]
    %v132 = vld [vmem:[#allocation5 + $0x2a8] sm:$0xff]
    %v133 = vld [vmem:[#allocation5 + $0x2b0] sm:$0xff]
    %v134 = vld [vmem:[#allocation5 + $0x2b8] sm:$0xff]
    %v135 = vld [vmem:[#allocation5 + $0x2c0] sm:$0xff]
    %v136 = vld [vmem:[#allocation5 + $0x2c8] sm:$0xff]
    %v137 = vld [vmem:[#allocation5 + $0x2d0] sm:$0xff]
    %v138 = vld [vmem:[#allocation5 + $0x2d8] sm:$0xff]
    %v139 = vld [vmem:[#allocation5 + $0x2e0] sm:$0xff]
    %v140 = vld [vmem:[#allocation5 + $0x2e8] sm:$0xff]
    %v141 = vld [vmem:[#allocation5 + $0x2f0] sm:$0xff]
    %v142 = vld [vmem:[#allocation5 + $0x2f8] sm:$0xff]
    %v143 = vld [vmem:[#allocation5 + $0x300] sm:$0xff]
    %v144 = vld [vmem:[#allocation5 + $0x308] sm:$0xff]
    %v145 = vld [vmem:[#allocation5 + $0x310] sm:$0xff]
    %v146 = vld [vmem:[#allocation5 + $0x318] sm:$0xff]
    %v147 = vld [vmem:[#allocation5 + $0x320] sm:$0xff]
    %v148 = vld [vmem:[#allocation5 + $0x328] sm:$0xff]
    %v149 = vld [vmem:[#allocation5 + $0x330] sm:$0xff]
    %v150 = vld [vmem:[#allocation5 + $0x338] sm:$0xff]
    %v151 = vld [vmem:[#allocation5 + $0x340] sm:$0xff]
    %v152 = vld [vmem:[#allocation5 + $0x348] sm:$0xff]
    %v153 = vld [vmem:[#allocation5 + $0x350] sm:$0xff]
    %v154 = vld [vmem:[#allocation5 + $0x358] sm:$0xff]
    %v155 = vld [vmem:[#allocation5 + $0x360] sm:$0xff]
    %v156 = vld [vmem:[#allocation5 + $0x368] sm:$0xff]
    %v157 = vld [vmem:[#allocation5 + $0x370] sm:$0xff]
    %v158 = vld [vmem:[#allocation5 + $0x378] sm:$0xff]
    %v159 = vld [vmem:[#allocation5 + $0x380] sm:$0xff]
    %v160 = vld [vmem:[#allocation5 + $0x388] sm:$0xff]
    %v161 = vld [vmem:[#allocation5 + $0x390] sm:$0xff]
    %v162 = vld [vmem:[#allocation5 + $0x398] sm:$0xff]
    %v163 = vld [vmem:[#allocation5 + $0x3a0] sm:$0xff]
    %v164 = vld [vmem:[#allocation5 + $0x3a8] sm:$0xff]
    %v165 = vld [vmem:[#allocation5 + $0x3b0] sm:$0xff]
    %v166 = vld [vmem:[#allocation5 + $0x3b8] sm:$0xff]
    %v167 = vld [vmem:[#allocation5 + $0x3c0] sm:$0xff]
    %v168 = vld [vmem:[#allocation5 + $0x3c8] sm:$0xff]
    %v169 = vld [vmem:[#allocation5 + $0x3d0] sm:$0xff]
    %v170 = vld [vmem:[#allocation5 + $0x3d8] sm:$0xff]
    %v171 = vld [vmem:[#allocation5 + $0x3e0] sm:$0xff]
    %v172 = vld [vmem:[#allocation5 + $0x3e8] sm:$0xff]
    %v173 = vld [vmem:[#allocation5 + $0x3f0] sm:$0xff]
    %v174 = vld [vmem:[#allocation5 + $0x3f8] sm:$0xff]
    %v175 = vld [vmem:[%s2] sm:$0xf]
    %v177 = vlaneseq
    %v178 = vshrl.u32 %v177, 7
    %v179 = vsub.s32 0, %v178
    %v180 = vrot.slane %v175, %v179
    %v181 = vlaneseq
    %v182 = vshrl.u32 %v181, 7
    %v183 = vsub.s32 1, %v182
    %v184 = vrot.slane %v175, %v183
    %v185 = vlaneseq
    %v186 = vshrl.u32 %v185, 7
    %v187 = vsub.s32 2, %v186
    %v188 = vrot.slane %v175, %v187
    %v189 = vlaneseq
    %v190 = vshrl.u32 %v189, 7
    %v191 = vsub.s32 3, %v190
    %v192 = vrot.slane %v175, %v191
    %197 = vmatprep.subr.mxu0 %v48
    %198 = vmatpush1.msra.mxu0 %v47
    %199 = vmatprep.subr.mxu0 %v52
    %200 = vmatpush1.msra.mxu0 %v51
    %201 = vmatprep.subr.mxu0 %v56
    %202 = vmatpush1.msra.mxu0 %v55
    %203 = vmatprep.subr.mxu0 %v60
    %204 = vmatpush1.msra.mxu0 %v59
    %205 = vmatprep.subr.mxu0 %v64
    %206 = vmatpush1.msra.mxu0 %v63
    %207 = vmatprep.subr.mxu0 %v68
    %208 = vmatpush1.msra.mxu0 %v67
    %209 = vmatprep.subr.mxu0 %v72
    %210 = vmatpush1.msra.mxu0 %v71
    %211 = vmatprep.subr.mxu0 %v76
    %212 = vmatpush1.msra.mxu0 %v75
    %213 = vmatprep.subr.mxu0 %v80
    %214 = vmatpush1.msra.mxu0 %v79
    %215 = vmatprep.subr.mxu0 %v84
    %216 = vmatpush1.msra.mxu0 %v83
    %217 = vmatprep.subr.mxu0 %v88
    %218 = vmatpush1.msra.mxu0 %v87
    %219 = vmatprep.subr.mxu0 %v92
    %220 = vmatpush1.msra.mxu0 %v91
    %221 = vmatprep.subr.mxu0 %v96
    %222 = vmatpush1.msra.mxu0 %v95
    %223 = vmatprep.subr.mxu0 %v100
    %224 = vmatpush1.msra.mxu0 %v99
    %225 = vmatprep.subr.mxu0 %v104
    %226 = vmatpush1.msra.mxu0 %v103
    %227 = vmatprep.subr.mxu0 %v108
    %228 = vmatpush1.msra.mxu0 %v107
    %229 = vmatprep.subr.mxu0 %v112
    %230 = vmatpush1.msra.mxu0 %v111
    %231 = vmatprep.subr.mxu0 %v116
    %232 = vmatpush1.msra.mxu0 %v115
    %233 = vmatprep.subr.mxu0 %v120
    %234 = vmatpush1.msra.mxu0 %v119
    %235 = vmatprep.subr.mxu0 %v124
    %236 = vmatpush1.msra.mxu0 %v123
    %237 = vmatprep.subr.mxu0 %v128
    %238 = vmatpush1.msra.mxu0 %v127
    %239 = vmatprep.subr.mxu0 %v132
    %240 = vmatpush1.msra.mxu0 %v131
    %241 = vmatprep.subr.mxu0 %v136
    %242 = vmatpush1.msra.mxu0 %v135
    %243 = vmatprep.subr.mxu0 %v140
    %244 = vmatpush1.msra.mxu0 %v139
    %245 = vmatprep.subr.mxu0 %v144
    %246 = vmatpush1.msra.mxu0 %v143
    %247 = vmatprep.subr.mxu0 %v148
    %248 = vmatpush1.msra.mxu0 %v147
    %249 = vmatprep.subr.mxu0 %v152
    %250 = vmatpush1.msra.mxu0 %v151
    %251 = vmatprep.subr.mxu0 %v156
    %252 = vmatpush1.msra.mxu0 %v155
    %253 = vmatprep.subr.mxu0 %v160
    %254 = vmatpush1.msra.mxu0 %v159
    %255 = vmatprep.subr.mxu0 %v164
    %256 = vmatpush1.msra.mxu0 %v163
    %257 = vmatprep.subr.mxu0 %v168
    %258 = vmatpush1.msra.mxu0 %v167
    %259 = vmatprep.subr.mxu0 %v172
    %260 = vmatpush1.msra.mxu0 %v171
    %261 = vmatprep.mubr.f32.mxu0 %v44
    %262 = vmatmul.mubr.f32.gmra.mrb[0].mxu0 %v43
    %v263 = vpop.f32.mrb[0].mxu0
    %v264 = vadd.f32 %v180, %v263
    %v265 = vpop.f32.mrb[0].mxu0
    %v266 = vadd.f32 %v184, %v265
    %267 = vmatprep.mubr.f32.mxu0 %v46
    %268 = vmatmul.mubr.f32.gmra.mrb[0].mxu0 %v45
    %v269 = vpop.f32.mrb[0].mxu0
    %v270 = vadd.f32 %v180, %v269
    %v271 = vpop.f32.mrb[0].mxu0
    %v272 = vadd.f32 %v184, %v271
    %273 = vdwg.mxu0
    %274 = vmatprep.subr.mxu0 %v50
    %275 = vmatpush1.msra.mxu0 %v49
    %276 = vmatprep.subr.mxu0 %v54
    %277 = vmatpush1.msra.mxu0 %v53
    %278 = vmatprep.subr.mxu0 %v58
    %279 = vmatpush1.msra.mxu0 %v57
    %280 = vmatprep.subr.mxu0 %v62
    %281 = vmatpush1.msra.mxu0 %v61
    %282 = vmatprep.subr.mxu0 %v66
    %283 = vmatpush1.msra.mxu0 %v65
    %284 = vmatprep.subr.mxu0 %v70
    %285 = vmatpush1.msra.mxu0 %v69
    %286 = vmatprep.subr.mxu0 %v74
    %287 = vmatpush1.msra.mxu0 %v73
    %288 = vmatprep.subr.mxu0 %v78
    %289 = vmatpush1.msra.mxu0 %v77
    %290 = vmatprep.subr.mxu0 %v82
    %291 = vmatpush1.msra.mxu0 %v81
    %292 = vmatprep.subr.mxu0 %v86
    %293 = vmatpush1.msra.mxu0 %v85
    %294 = vmatprep.subr.mxu0 %v90
    %295 = vmatpush1.msra.mxu0 %v89
    %296 = vmatprep.subr.mxu0 %v94
    %297 = vmatpush1.msra.mxu0 %v93
    %298 = vmatprep.subr.mxu0 %v98
    %299 = vmatpush1.msra.mxu0 %v97
    %300 = vmatprep.subr.mxu0 %v102
    %301 = vmatpush1.msra.mxu0 %v101
    %302 = vmatprep.subr.mxu0 %v106
    %303 = vmatpush1.msra.mxu0 %v105
    %304 = vmatprep.subr.mxu0 %v110
    %305 = vmatpush1.msra.mxu0 %v109
    %306 = vmatprep.subr.mxu0 %v114
    %307 = vmatpush1.msra.mxu0 %v113
    %308 = vmatprep.subr.mxu0 %v118
    %309 = vmatpush1.msra.mxu0 %v117
    %310 = vmatprep.subr.mxu0 %v122
    %311 = vmatpush1.msra.mxu0 %v121
    %312 = vmatprep.subr.mxu0 %v126
    %313 = vmatpush1.msra.mxu0 %v125
    %314 = vmatprep.subr.mxu0 %v130
    %315 = vmatpush1.msra.mxu0 %v129
    %316 = vmatprep.subr.mxu0 %v134
    %317 = vmatpush1.msra.mxu0 %v133
    %318 = vmatprep.subr.mxu0 %v138
    %319 = vmatpush1.msra.mxu0 %v137
    %320 = vmatprep.subr.mxu0 %v142
    %321 = vmatpush1.msra.mxu0 %v141
    %322 = vmatprep.subr.mxu0 %v146
    %323 = vmatpush1.msra.mxu0 %v145
    %324 = vmatprep.subr.mxu0 %v150
    %325 = vmatpush1.msra.mxu0 %v149
    %326 = vmatprep.subr.mxu0 %v154
    %327 = vmatpush1.msra.mxu0 %v153
    %328 = vmatprep.subr.mxu0 %v158
    %329 = vmatpush1.msra.mxu0 %v157
    %330 = vmatprep.subr.mxu0 %v162
    %331 = vmatpush1.msra.mxu0 %v161
    %332 = vmatprep.subr.mxu0 %v166
    %333 = vmatpush1.msra.mxu0 %v165
    %334 = vmatprep.subr.mxu0 %v170
    %335 = vmatpush1.msra.mxu0 %v169
    %336 = vmatprep.subr.mxu0 %v174
    %337 = vmatpush1.msra.mxu0 %v173
    %338 = vmatprep.mubr.f32.mxu0 %v44
    %339 = vmatmul.mubr.f32.gmra.mrb[0].mxu0 %v43
    %v340 = vpop.f32.mrb[0].mxu0
    %v341 = vadd.f32 %v188, %v340
    %v342 = vpop.f32.mrb[0].mxu0
    %v343 = vadd.f32 %v192, %v342
    %344 = vmatprep.mubr.f32.mxu0 %v46
    %345 = vmatmul.mubr.f32.gmra.mrb[0].mxu0 %v45
    %v346 = vpop.f32.mrb[0].mxu0
    %v347 = vadd.f32 %v188, %v346
    %v348 = vpop.f32.mrb[0].mxu0
    %v349 = vadd.f32 %v192, %v348
    %350 = vdwg.mxu0
    %v351 = vmax.f32 %v264, 0.0
    %v352 = vmax.f32 %v266, 0.0
    %v353 = vmax.f32 %v341, 0.0
    %v354 = vmax.f32 %v343, 0.0
    %v355 = vmax.f32 %v270, 0.0
    %v356 = vmax.f32 %v272, 0.0
    %v357 = vmax.f32 %v347, 0.0
    %v358 = vmax.f32 %v349, 0.0
    %359 = vst [vmem:[#allocation7] sm:$0xff] %v351
    %360 = vst [vmem:[#allocation7 + $0x8] sm:$0xff] %v352
    %361 = vst [vmem:[#allocation7 + $0x10] sm:$0xff] %v353
    %362 = vst [vmem:[#allocation7 + $0x18] sm:$0xff] %v354
    %363 = vst [vmem:[#allocation7 + $0x20] sm:$0xff] %v355
    %364 = vst [vmem:[#allocation7 + $0x28] sm:$0xff] %v356
    %365 = vst [vmem:[#allocation7 + $0x30] sm:$0xff] %v357
    %366 = vst [vmem:[#allocation7 + $0x38] sm:$0xff] %v358
    // Predicated region
    $region22: #{mlp_forward.1} parent=1 // pred_check
      _
    $region23: #{mlp_forward.1} parent=1 // pred_check_branch
      %368 = sbr.rel (0) target = $region25
    $region24: #{mlp_forward.1} parent=1 // pred_region
      %s370 = ssub.s32 1024, 1024
      %371 = vsyncadd [#allocation4], %s370
      %s372 = sshll.u32 [#allocation7], 4
      %s373 = int_to_ptr.vmem [resolvable:$true] %s372
      %378 = dma.vmem_to_hbm [thread:$0]  %s373, 1024, %s3, [#allocation4], 512, 512, 32
    $region25: #{mlp_forward.1} parent=1 // pred_fallthru
      _
    // Predicated region
    $region26: #{mlp_forward.1} parent=1 // pred_check
      _
    $region27: #{mlp_forward.1} parent=1 // pred_check_branch
      %380 = sbr.rel (0) target = $region29
    $region28: #{mlp_forward.1} parent=1 // pred_region
      %381 = dma.done [#allocation4], 1024
    $region29: #{mlp_forward.1} parent=1 // pred_fallthru
      _
    %382 = vsyncpa [#allocation3], 1
    %383 = vsyncpa [#allocation6], 1
    %384 = vsyncpa [#allocation4], 1

</llo_original>
